<compile_context>
chip_gen: v6e
topology: v6e:2x2x1
jax: 0.10.0
libtpu: 0.0.40
codegen_flags: <defaults>
</compile_context>

<pallas_src>
import functools

import jax
import jax.numpy as jnp
from jax.experimental import pallas as pl
from jax.experimental.pallas import tpu as pltpu


# --------------------------------------------------------------------------
# tiling plan
# --------------------------------------------------------------------------
def _cdiv(a, b):
    return (a + b - 1) // b


def _round_up(a, b):
    return _cdiv(a, b) * b


def _plan(hw, c, itemsize):
    """Pick (lane chunk, chunks/step, pixel tile, padded hw, grid T)."""
    hw128 = _round_up(hw, 128)
    # lane chunk per inner iteration: keep (C, chunk) values around <=16K elems
    ch = max(128, min(2048, (16384 // max(c, 1)) // 128 * 128))
    ch = min(ch, hw128)
    # ~2 MiB of logits per grid step amortizes per-step pipeline overhead
    n_chunks = max(1, min(64, (2 * 1024 * 1024) // max(1, c * ch * itemsize)))
    n_chunks = min(n_chunks, _cdiv(hw128, ch))
    tile = ch * n_chunks
    hw_pad = _round_up(hw, tile)
    return ch, n_chunks, tile, hw_pad, hw_pad // tile


# --------------------------------------------------------------------------
# Kernel 1: per-pixel cross-entropy loss + softmax prob at the target class
# --------------------------------------------------------------------------
def _pixel_ce_kernel(score_ref, target_ref, loss_ref, prob_ref, *,
                     ignore_label, chunk, n_chunks):
    """score_ref (1,C,TILE) logits (channels on sublanes), target_ref (1,1,TILE)
    int32 (padded pixels = ignore_label).  Writes loss (0 for ignored) and
    prob (+inf for ignored/padded) as lane-dense (1,1,TILE) f32 blocks."""
    c = score_ref.shape[1]
    cls = jax.lax.broadcasted_iota(jnp.int32, (c, chunk), 0)   # hoisted out of loop

    def body(ci, carry):
        off = pl.multiple_of(ci * chunk, 128)
        logits = score_ref[0, :, pl.ds(off, chunk)].astype(jnp.float32)  # (C, CH)
        tgt = target_ref[0, :, pl.ds(off, chunk)]                        # (1, CH)
        valid = tgt != ignore_label
        tgt0 = jnp.where(valid, tgt, 0)                                  # torch tmp_target

        m = jnp.max(logits, axis=0, keepdims=True)                       # (1, CH)
        z = logits - m
        lse = jnp.log(jnp.sum(jnp.exp(z), axis=0, keepdims=True))        # (1, CH)
        z_t = jnp.sum(jnp.where(cls == tgt0, z, 0.0), axis=0, keepdims=True)

        loss = lse - z_t                       # -log softmax[target]
        prob = jnp.exp(z_t - lse)              # softmax prob at target
        loss_ref[0, :, pl.ds(off, chunk)] = jnp.where(valid, loss, 0.0)
        prob_ref[0, :, pl.ds(off, chunk)] = jnp.where(valid, prob, jnp.inf)
        return carry

    jax.lax.fori_loop(0, n_chunks, body, 0)


def _per_pixel_ce(score3, target3, *, ignore_label, ch, n_chunks, tile, grid_t):
    n, c, _ = score3.shape
    hw_pad = target3.shape[-1]
    kernel = functools.partial(_pixel_ce_kernel, ignore_label=ignore_label,
                               chunk=ch, n_chunks=n_chunks)
    return pl.pallas_call(
        kernel,
        out_shape=(jax.ShapeDtypeStruct((n, 1, hw_pad), jnp.float32),
                   jax.ShapeDtypeStruct((n, 1, hw_pad), jnp.float32)),
        grid_spec=pltpu.PrefetchScalarGridSpec(
            num_scalar_prefetch=0,
            grid=(n, grid_t),
            in_specs=[pl.BlockSpec((1, c, tile), lambda i, t: (i, 0, t)),
                      pl.BlockSpec((1, 1, tile), lambda i, t: (i, 0, t))],
            out_specs=[pl.BlockSpec((1, 1, tile), lambda i, t: (i, 0, t)),
                       pl.BlockSpec((1, 1, tile), lambda i, t: (i, 0, t))]),
        compiler_params=pltpu.CompilerParams(
            dimension_semantics=("parallel", "parallel")),
    )(score3, target3)


# --------------------------------------------------------------------------
# Kernel 2: radix-select histogram pass (exact k-th smallest prob)
# --------------------------------------------------------------------------
def _radix_hist_kernel(sel_ref, prob_ref, hist_ref, *, chunk, n_chunks, n_buckets):
    """Bucket counts of 4 bits of the f32 bit pattern of prob, restricted to
    elements whose already-resolved high bits match `hi`.  Probs are
    non-negative, so bit-pattern order == value order."""
    hi = sel_ref[0]
    mask_hi = sel_ref[1]
    shift = sel_ref[2]
    buckets = jax.lax.broadcasted_iota(jnp.int32, (n_buckets, 1), 0)

    def body(ci, counts):
        off = pl.multiple_of(ci * chunk, 128)
        bits = pltpu.bitcast(prob_ref[0, :, pl.ds(off, chunk)], jnp.int32)  # (1, CH)
        match = (bits & mask_hi) == hi
        digit = jnp.right_shift(bits, shift) & (n_buckets - 1)
        hits = (digit == buckets) & match                                    # (B, CH)
        return counts + jnp.sum(hits.astype(jnp.int32), axis=1)

    counts = jax.lax.fori_loop(0, n_chunks, body,
                               jnp.zeros((n_buckets,), jnp.int32))
    hist_ref[...] = counts.reshape(1, 1, 1, n_buckets)


def _radix_hist(sel, prob, *, ch, n_chunks, tile, grid_t, n_buckets):
    n = prob.shape[0]
    kernel = functools.partial(_radix_hist_kernel, chunk=ch, n_chunks=n_chunks,
                               n_buckets=n_buckets)
    return pl.pallas_call(
        kernel,
        out_shape=jax.ShapeDtypeStruct((n, grid_t, 1, n_buckets), jnp.int32),
        grid_spec=pltpu.PrefetchScalarGridSpec(
            num_scalar_prefetch=1,
            grid=(n, grid_t),
            in_specs=[pl.BlockSpec((1, 1, tile), lambda i, t, s: (i, 0, t))],
            out_specs=pl.BlockSpec((1, 1, 1, n_buckets),
                                   lambda i, t, s: (i, t, 0, 0))),
        compiler_params=pltpu.CompilerParams(
            dimension_semantics=("parallel", "parallel")),
    )(sel, prob)


def _radix_select(prob, rank, *, ch, n_chunks, tile, grid_t):
    """Exact rank-th smallest value of `prob` (non-negative f32, may contain
    +inf markers) via an 8-pass / 4-bit radix select on the bit pattern."""
    n_buckets = 16
    lanes = jnp.arange(n_buckets, dtype=jnp.int32)
    rank = rank.astype(jnp.int32)
    hi = jnp.int32(0)
    for d in range(8):
        shift = 28 - 4 * d
        mask_hi = 0 if d == 0 else -(1 << (shift + 4))   # keep already-resolved bits
        sel = jnp.stack([hi, jnp.int32(mask_hi), jnp.int32(shift)])
        part = _radix_hist(sel, prob, ch=ch, n_chunks=n_chunks, tile=tile,
                           grid_t=grid_t, n_buckets=n_buckets)
        counts = jnp.sum(part, axis=(0, 1, 2))           # (16,)
        cum = jnp.cumsum(counts)
        jstar = jnp.sum((cum <= rank).astype(jnp.int32))  # bucket holding `rank`
        rank = rank - jnp.sum(jnp.where(lanes < jstar, counts, 0))
        hi = hi | (jstar << shift)
    return jax.lax.bitcast_convert_type(hi, jnp.float32)


# --------------------------------------------------------------------------
# Kernel 3: OHEM masked reduction -> per-block partial (sum, count)
# --------------------------------------------------------------------------
def _ohem_reduce_kernel(thr_ref, loss_ref, prob_ref, sum_ref, cnt_ref, *,
                        chunk, n_chunks):
    """Threshold arrives as the int32 bit pattern of a non-negative f32 in
    SMEM; comparing bit patterns of non-negative floats preserves order, and
    the +inf marker of ignored/padded pixels can never compare below it, so
    no separate validity stream is needed."""
    thr_bits = thr_ref[0]

    def body(ci, carry):
        s, c = carry
        off = pl.multiple_of(ci * chunk, 128)
        pbits = pltpu.bitcast(prob_ref[0, :, pl.ds(off, chunk)], jnp.int32)
        keep = (pbits < thr_bits).astype(jnp.float32)                     # (1, CH)
        s = s + jnp.sum(keep * loss_ref[0, :, pl.ds(off, chunk)])
        c = c + jnp.sum(keep)
        return s, c

    zero = jnp.zeros((1, 1), jnp.float32)
    s, c = jax.lax.fori_loop(0, n_chunks, body, (zero, zero))
    sum_ref[...] = s.reshape(1, 1, 1, 1)
    cnt_ref[...] = c.reshape(1, 1, 1, 1)


def _ohem_reduce(thr_bits, loss, prob, *, ch, n_chunks, tile, grid_t):
    n = loss.shape[0]
    kernel = functools.partial(_ohem_reduce_kernel, chunk=ch, n_chunks=n_chunks)
    return pl.pallas_call(
        kernel,
        out_shape=(jax.ShapeDtypeStruct((n, grid_t, 1, 1), jnp.float32),
                   jax.ShapeDtypeStruct((n, grid_t, 1, 1), jnp.float32)),
        grid_spec=pltpu.PrefetchScalarGridSpec(
            num_scalar_prefetch=1,
            grid=(n, grid_t),
            in_specs=[pl.BlockSpec((1, 1, tile), lambda i, t, s: (i, 0, t)),
                      pl.BlockSpec((1, 1, tile), lambda i, t, s: (i, 0, t))],
            out_specs=[pl.BlockSpec((1, 1, 1, 1), lambda i, t, s: (i, t, 0, 0)),
                       pl.BlockSpec((1, 1, 1, 1), lambda i, t, s: (i, t, 0, 0))]),
        compiler_params=pltpu.CompilerParams(
            dimension_semantics=("parallel", "parallel")),
    )(thr_bits, loss, prob)


# --------------------------------------------------------------------------
# Wrapper: full OhemCrossEntropy.forward semantics
# --------------------------------------------------------------------------
def ohem_cross_entropy(score, target, *, ignore_label=-1, thres=0.7,
                       min_kept=100000):
    """score: (N, C, H', W') float logits (f32 or bf16); target: (N, H, W) ints."""
    min_kept = max(1, int(min_kept))
    n, c, ph, pw = score.shape
    _, h, w = target.shape
    if (ph, pw) != (h, w):
        # glue: bilinear upsample (align_corners=False), matches F.upsample(bilinear)
        score = jax.image.resize(score, (n, c, h, w), method="bilinear")

    hw = h * w
    ch, n_chunks, tile, hw_pad, grid_t = _plan(hw, c, jnp.dtype(score.dtype).itemsize)

    score3 = score.reshape(n, c, hw)                 # free reshape: no transpose/astype/pad
    tgt = target.reshape(n, hw).astype(jnp.int32)
    if hw_pad != hw:
        tgt = jnp.pad(tgt, ((0, 0), (0, hw_pad - hw)),
                      constant_values=ignore_label)  # only the cheap target is padded
    tgt3 = tgt.reshape(n, 1, hw_pad)

    loss, prob = _per_pixel_ce(score3, tgt3, ignore_label=ignore_label,
                               ch=ch, n_chunks=n_chunks, tile=tile, grid_t=grid_t)

    # --- OHEM threshold: k-th smallest target-prob among valid pixels -------
    thres_f = jnp.float32(thres)
    n_valid = jnp.sum(jnp.isfinite(prob), dtype=jnp.int32)   # ignored/padded are +inf
    n_le = jnp.sum(prob <= thres_f, dtype=jnp.int32)
    k = jnp.minimum(jnp.int32(min_kept), n_valid - 1)

    def _exact_kth():
        # rare case: the k-th smallest prob is > thres, so its exact value matters
        return jnp.maximum(
            _radix_select(prob, k, ch=ch, n_chunks=n_chunks, tile=tile,
                          grid_t=grid_t),
            thres_f)

    # common case: >= k+1 valid probs are <= thres  =>  threshold == thres
    threshold = jax.lax.cond(n_le <= k, _exact_kth, lambda: thres_f)
    thr_bits = jax.lax.bitcast_convert_type(threshold, jnp.int32).reshape(1)

    # --- mean over kept (valid & prob < threshold) pixels --------------------
    psum, pcnt = _ohem_reduce(thr_bits, loss, prob, ch=ch, n_chunks=n_chunks,
                              tile=tile, grid_t=grid_t)
    # NaN if nothing kept, matching torch's mean of an empty tensor
    return jnp.sum(psum) / jnp.sum(pcnt)


# --------------------------------------------------------------------------
# Pure-JAX reference (mirrors the PyTorch module) for testing
# --------------------------------------------------------------------------
def _reference(score, target, ignore_label, thres, min_kept):
    n, c, ph, pw = score.shape
    _, h, w = target.shape
    if (ph, pw) != (h, w):
        score = jax.image.resize(score, (n, c, h, w), method="bilinear")
    logits = jnp.transpose(score, (0, 2, 3, 1)).reshape(-1, c).astype(jnp.float32)
    tgt = target.reshape(-1)
    valid = tgt != ignore_label
    t0 = jnp.where(valid, tgt, 0)
    logp = jax.nn.log_softmax(logits, axis=-1)
    ce = -jnp.take_along_axis(logp, t0[:, None], axis=-1)[:, 0]
    ce = jnp.where(valid, ce, 0.0)
    prob = jnp.take_along_axis(jax.nn.softmax(logits, axis=-1),
                               t0[:, None], axis=-1)[:, 0]
    pm = jnp.where(valid, prob, jnp.inf)
    n_valid = jnp.sum(valid)
    kk = jnp.clip(jnp.minimum(min_kept, n_valid - 1), 0, pm.size - 1)
    threshold = jnp.maximum(jnp.sort(pm)[kk], jnp.float32(thres))
    keep = valid & (pm < threshold)
    return jnp.sum(jnp.where(keep, ce, 0.0)) / jnp.sum(keep)


if __name__ == "__main__":
    key = jax.random.PRNGKey(0)
    k_score, k_tgt, k_ign = jax.random.split(key, 3)

    N, C, H, W = 2, 4, 16, 16
    score = jax.random.normal(k_score, (N, C, H, W), dtype=jnp.float32)
    target = jax.random.randint(k_tgt, (N, H, W), 0, C).astype(jnp.int32)
    ignore = jax.random.bernoulli(k_ign, 0.1, (N, H, W))
    target = jnp.where(ignore, -1, target)

    # Path A: common case (threshold == thres; radix select not executed).
    fn_a = jax.jit(functools.partial(ohem_cross_entropy, ignore_label=-1,
                                     thres=0.7, min_kept=50))
    loss_a = jax.block_until_ready(fn_a(score, target))
    ref_a = _reference(score, target, -1, 0.7, 50)
    assert loss_a.shape == () and bool(jnp.isfinite(loss_a))
    assert abs(float(loss_a) - float(ref_a)) <= 1e-4 * abs(float(ref_a)) + 1e-5, \
        (float(loss_a), float(ref_a))

    # Path B: min_kept > #valid forces the exact radix-select threshold path.
    fn_b = jax.jit(functools.partial(ohem_cross_entropy, ignore_label=-1,
                                     thres=0.7, min_kept=10**6))
    loss_b = jax.block_until_ready(fn_b(score, target))
    ref_b = _reference(score, target, -1, 0.7, 10**6)
    assert bool(jnp.isfinite(loss_b))
    assert abs(float(loss_b) - float(ref_b)) <= 1e-2 * abs(float(ref_b)) + 1e-4, \
        (float(loss_b), float(ref_b))

    print("KERNEL_OK")
</pallas_src>

<mosaic_0001>
module attributes {stable_mosaic.version = 11 : i64} {
  func.func @_pixel_ce_kernel(%arg0: i32, %arg1: i32, %arg2: memref<1x4x256xf32, #tpu.memory_space<vmem>>, %arg3: memref<1x1x256xi32, #tpu.memory_space<vmem>>, %arg4: memref<1x1x256xf32, #tpu.memory_space<vmem>>, %arg5: memref<1x1x256xf32, #tpu.memory_space<vmem>>) attributes {dimension_semantics = [#tpu.dimension_semantics<parallel>, #tpu.dimension_semantics<parallel>], iteration_bounds = array<i64: 2, 1>, scalar_prefetch = 0 : i64, scratch_operands = 0 : i64, tpu.core_type = #tpu.core_type<tc>, window_params = [{transform_indices = @transform_0, window_bounds = array<i64: 1, 4, 256>}, {transform_indices = @transform_1, window_bounds = array<i64: 1, 1, 256>}, {transform_indices = @transform_2, window_bounds = array<i64: 1, 1, 256>}, {transform_indices = @transform_3, window_bounds = array<i64: 1, 1, 256>}]} {
    %0 = tpu.iota {dimensions = array<i32: 0>} : vector<4x256xi32>
    %c0_i32 = arith.constant 0 : i32
    %c256_i32 = arith.constant 256 : i32
    %1 = arith.muli %c0_i32, %c256_i32 : i32
    %2 = tpu.assume_multiple %1, 128 : i32
    %c0 = arith.constant 0 : index
    %c0_0 = arith.constant 0 : index
    %3 = arith.index_cast %2 : i32 to index
    %4 = vector.load %arg2[%c0, %c0_0, %3] : memref<1x4x256xf32, #tpu.memory_space<vmem>>, vector<1x4x256xf32>
    %5 = vector.shape_cast %4 : vector<1x4x256xf32> to vector<4x256xf32>
    %c0_1 = arith.constant 0 : index
    %c0_2 = arith.constant 0 : index
    %6 = arith.index_cast %2 : i32 to index
    %7 = vector.load %arg3[%c0_1, %c0_2, %6] : memref<1x1x256xi32, #tpu.memory_space<vmem>>, vector<1x1x256xi32>
    %8 = vector.shape_cast %7 : vector<1x1x256xi32> to vector<1x256xi32>
    %c-1_i32 = arith.constant -1 : i32
    %9 = vector.broadcast %c-1_i32 : i32 to vector<1x256xi32>
    %10 = arith.cmpi ne, %8, %9 : vector<1x256xi32>
    %c0_i32_3 = arith.constant 0 : i32
    %11 = vector.broadcast %c0_i32_3 : i32 to vector<1x256xi32>
    %12 = arith.select %10, %8, %11 : vector<1x256xi1>, vector<1x256xi32>
    %cst = arith.constant dense<0xFF800000> : vector<256xf32>
    %13 = vector.multi_reduction <maximumf>, %5, %cst [0] : vector<4x256xf32> to vector<256xf32>
    %14 = vector.shape_cast %13 : vector<256xf32> to vector<1x256xf32>
    %15 = vector.broadcast %14 : vector<1x256xf32> to vector<4x256xf32>
    %16 = arith.subf %5, %15 : vector<4x256xf32>
    %17 = math.exp %16 : vector<4x256xf32>
    %cst_4 = arith.constant dense<0.000000e+00> : vector<256xf32>
    %18 = vector.multi_reduction <add>, %17, %cst_4 [0] : vector<4x256xf32> to vector<256xf32>
    %19 = vector.shape_cast %18 : vector<256xf32> to vector<1x256xf32>
    %20 = math.log %19 : vector<1x256xf32>
    %21 = vector.broadcast %12 : vector<1x256xi32> to vector<4x256xi32>
    %22 = arith.cmpi eq, %0, %21 : vector<4x256xi32>
    %cst_5 = arith.constant 0.000000e+00 : f32
    %23 = vector.broadcast %cst_5 : f32 to vector<4x256xf32>
    %24 = arith.select %22, %16, %23 : vector<4x256xi1>, vector<4x256xf32>
    %cst_6 = arith.constant dense<0.000000e+00> : vector<256xf32>
    %25 = vector.multi_reduction <add>, %24, %cst_6 [0] : vector<4x256xf32> to vector<256xf32>
    %26 = vector.shape_cast %25 : vector<256xf32> to vector<1x256xf32>
    %27 = arith.subf %20, %26 : vector<1x256xf32>
    %28 = arith.subf %26, %20 : vector<1x256xf32>
    %29 = math.exp %28 : vector<1x256xf32>
    %cst_7 = arith.constant 0.000000e+00 : f32
    %30 = vector.broadcast %cst_7 : f32 to vector<1x256xf32>
    %31 = arith.select %10, %27, %30 : vector<1x256xi1>, vector<1x256xf32>
    %c0_8 = arith.constant 0 : index
    %c0_9 = arith.constant 0 : index
    %32 = arith.index_cast %2 : i32 to index
    %33 = vector.load %arg4[%c0_8, %c0_9, %32] : memref<1x1x256xf32, #tpu.memory_space<vmem>>, vector<1x1x256xf32>
    %34 = vector.shape_cast %33 : vector<1x1x256xf32> to vector<1x256xf32>
    %35 = vector.shape_cast %31 : vector<1x256xf32> to vector<1x1x256xf32>
    tpu.vector_store %arg4[%c0_8, %c0_9, %32], %35 {strides = array<i32>} : memref<1x1x256xf32, #tpu.memory_space<vmem>>, vector<1x1x256xf32>,
    %cst_10 = arith.constant 0x7F800000 : f32
    %36 = vector.broadcast %cst_10 : f32 to vector<1x256xf32>
    %37 = arith.select %10, %29, %36 : vector<1x256xi1>, vector<1x256xf32>
    %c0_11 = arith.constant 0 : index
    %c0_12 = arith.constant 0 : index
    %38 = arith.index_cast %2 : i32 to index
    %39 = vector.load %arg5[%c0_11, %c0_12, %38] : memref<1x1x256xf32, #tpu.memory_space<vmem>>, vector<1x1x256xf32>
    %40 = vector.shape_cast %39 : vector<1x1x256xf32> to vector<1x256xf32>
    %41 = vector.shape_cast %37 : vector<1x256xf32> to vector<1x1x256xf32>
    tpu.vector_store %arg5[%c0_11, %c0_12, %38], %41 {strides = array<i32>} : memref<1x1x256xf32, #tpu.memory_space<vmem>>, vector<1x1x256xf32>,
    %c1_i32 = arith.constant 1 : i32
    return
  }
  func.func @transform_0(%arg0: i32, %arg1: i32) -> (i32, i32, i32) {
    %c0_i32 = arith.constant 0 : i32
    %c0_i32_0 = arith.constant 0 : i32
    return %arg0, %c0_i32, %arg1 : i32, i32, i32
  }
  func.func @transform_1(%arg0: i32, %arg1: i32) -> (i32, i32, i32) {
    %c0_i32 = arith.constant 0 : i32
    %c0_i32_0 = arith.constant 0 : i32
    return %arg0, %c0_i32, %arg1 : i32, i32, i32
  }
  func.func @transform_2(%arg0: i32, %arg1: i32) -> (i32, i32, i32) {
    %c0_i32 = arith.constant 0 : i32
    %c0_i32_0 = arith.constant 0 : i32
    return %arg0, %c0_i32, %arg1 : i32, i32, i32
  }
  func.func @transform_3(%arg0: i32, %arg1: i32) -> (i32, i32, i32) {
    %c0_i32 = arith.constant 0 : i32
    %c0_i32_0 = arith.constant 0 : i32
    return %arg0, %c0_i32, %arg1 : i32, i32, i32
  }
}

module attributes {stable_mosaic.version = 11 : i64} {
  func.func @_ohem_reduce_kernel(%arg0: i32, %arg1: i32, %arg2: memref<1xi32, #tpu.memory_space<smem>>, %arg3: memref<1x1x256xf32, #tpu.memory_space<vmem>>, %arg4: memref<1x1x256xf32, #tpu.memory_space<vmem>>, %arg5: memref<1x1x1x1xf32, #tpu.memory_space<vmem>>, %arg6: memref<1x1x1x1xf32, #tpu.memory_space<vmem>>) attributes {dimension_semantics = [#tpu.dimension_semantics<parallel>, #tpu.dimension_semantics<parallel>], iteration_bounds = array<i64: 2, 1>, scalar_prefetch = 1 : i64, scratch_operands = 0 : i64, tpu.core_type = #tpu.core_type<tc>, window_params = [{transform_indices = @transform_0, window_bounds = array<i64: 1, 1, 256>}, {transform_indices = @transform_1, window_bounds = array<i64: 1, 1, 256>}, {transform_indices = @transform_2, window_bounds = array<i64: 1, 1, 1, 1>}, {transform_indices = @transform_3, window_bounds = array<i64: 1, 1, 1, 1>}]} {
    %c0 = arith.constant 0 : index
    %0 = memref.load %arg2[%c0] : memref<1xi32, #tpu.memory_space<smem>>
    %cst = arith.constant 0.000000e+00 : f32
    %1 = vector.broadcast %cst : f32 to vector<1x1xf32>
    %c0_i32 = arith.constant 0 : i32
    %c256_i32 = arith.constant 256 : i32
    %2 = arith.muli %c0_i32, %c256_i32 : i32
    %3 = tpu.assume_multiple %2, 128 : i32
    %c0_0 = arith.constant 0 : index
    %c0_1 = arith.constant 0 : index
    %4 = arith.index_cast %3 : i32 to index
    %5 = vector.load %arg4[%c0_0, %c0_1, %4] : memref<1x1x256xf32, #tpu.memory_space<vmem>>, vector<1x1x256xf32>
    %6 = vector.shape_cast %5 : vector<1x1x256xf32> to vector<1x256xf32>
    %7 = tpu.bitcast %6 : vector<1x256xf32> -> vector<1x256xi32>
    %8 = vector.broadcast %0 : i32 to vector<1x256xi32>
    %9 = arith.cmpi slt, %7, %8 : vector<1x256xi32>
    %10 = arith.extui %9 : vector<1x256xi1> to vector<1x256xi32>
    %11 = arith.sitofp %10 : vector<1x256xi32> to vector<1x256xf32>
    %c0_2 = arith.constant 0 : index
    %c0_3 = arith.constant 0 : index
    %12 = arith.index_cast %3 : i32 to index
    %13 = vector.load %arg3[%c0_2, %c0_3, %12] : memref<1x1x256xf32, #tpu.memory_space<vmem>>, vector<1x1x256xf32>
    %14 = vector.shape_cast %13 : vector<1x1x256xf32> to vector<1x256xf32>
    %15 = arith.mulf %11, %14 : vector<1x256xf32>
    %16 = vector.shape_cast %15 : vector<1x256xf32> to vector<1x1x256xf32>
    %cst_4 = arith.constant dense<0.000000e+00> : vector<1xf32>
    %17 = vector.multi_reduction <add>, %16, %cst_4 [1, 2] : vector<1x1x256xf32> to vector<1xf32>
    %18 = vector.shape_cast %17 : vector<1xf32> to vector<1x1x1xf32>
    %19 = vector.extract %18[0, 0, 0] : f32 from vector<1x1x1xf32>
    %20 = vector.broadcast %19 : f32 to vector<1x1xf32>
    %21 = arith.addf %1, %20 : vector<1x1xf32>
    %22 = vector.shape_cast %11 : vector<1x256xf32> to vector<1x1x256xf32>
    %cst_5 = arith.constant dense<0.000000e+00> : vector<1xf32>
    %23 = vector.multi_reduction <add>, %22, %cst_5 [1, 2] : vector<1x1x256xf32> to vector<1xf32>
    %24 = vector.shape_cast %23 : vector<1xf32> to vector<1x1x1xf32>
    %25 = vector.extract %24[0, 0, 0] : f32 from vector<1x1x1xf32>
    %26 = vector.broadcast %25 : f32 to vector<1x1xf32>
    %27 = arith.addf %1, %26 : vector<1x1xf32>
    %c1_i32 = arith.constant 1 : i32
    %28 = vector.shape_cast %21 : vector<1x1xf32> to vector<1x1x1x1xf32>
    %c0_6 = arith.constant 0 : index
    %c0_7 = arith.constant 0 : index
    %c0_8 = arith.constant 0 : index
    %c0_9 = arith.constant 0 : index
    %29 = vector.load %arg5[%c0_6, %c0_7, %c0_8, %c0_9] : memref<1x1x1x1xf32, #tpu.memory_space<vmem>>, vector<1x1x1x1xf32>
    tpu.vector_store %arg5[%c0_6, %c0_7, %c0_8, %c0_9], %28 {strides = array<i32>} : memref<1x1x1x1xf32, #tpu.memory_space<vmem>>, vector<1x1x1x1xf32>,
    %30 = vector.shape_cast %27 : vector<1x1xf32> to vector<1x1x1x1xf32>
    %c0_10 = arith.constant 0 : index
    %c0_11 = arith.constant 0 : index
    %c0_12 = arith.constant 0 : index
    %c0_13 = arith.constant 0 : index
    %31 = vector.load %arg6[%c0_10, %c0_11, %c0_12, %c0_13] : memref<1x1x1x1xf32, #tpu.memory_space<vmem>>, vector<1x1x1x1xf32>
    tpu.vector_store %arg6[%c0_10, %c0_11, %c0_12, %c0_13], %30 {strides = array<i32>} : memref<1x1x1x1xf32, #tpu.memory_space<vmem>>, vector<1x1x1x1xf32>,
    return
  }
  func.func @transform_0(%arg0: i32, %arg1: i32, %arg2: memref<1xi32, #tpu.memory_space<smem>>) -> (i32, i32, i32) {
    %c0_i32 = arith.constant 0 : i32
    %c0_i32_0 = arith.constant 0 : i32
    return %arg0, %c0_i32, %arg1 : i32, i32, i32
  }
  func.func @transform_1(%arg0: i32, %arg1: i32, %arg2: memref<1xi32, #tpu.memory_space<smem>>) -> (i32, i32, i32) {
    %c0_i32 = arith.constant 0 : i32
    %c0_i32_0 = arith.constant 0 : i32
    return %arg0, %c0_i32, %arg1 : i32, i32, i32
  }
  func.func @transform_2(%arg0: i32, %arg1: i32, %arg2: memref<1xi32, #tpu.memory_space<smem>>) -> (i32, i32, i32, i32) {
    %c0_i32 = arith.constant 0 : i32
    %c0_i32_0 = arith.constant 0 : i32
    %c0_i32_1 = arith.constant 0 : i32
    return %arg0, %arg1, %c0_i32, %c0_i32_0 : i32, i32, i32, i32
  }
  func.func @transform_3(%arg0: i32, %arg1: i32, %arg2: memref<1xi32, #tpu.memory_space<smem>>) -> (i32, i32, i32, i32) {
    %c0_i32 = arith.constant 0 : i32
    %c0_i32_0 = arith.constant 0 : i32
    %c0_i32_1 = arith.constant 0 : i32
    return %arg0, %arg1, %c0_i32, %c0_i32_0 : i32, i32, i32, i32
  }
}

module attributes {stable_mosaic.version = 11 : i64} {
  func.func @_radix_hist_kernel(%arg0: i32, %arg1: i32, %arg2: memref<3xi32, #tpu.memory_space<smem>>, %arg3: memref<1x1x256xf32, #tpu.memory_space<vmem>>, %arg4: memref<1x1x1x16xi32, #tpu.memory_space<vmem>>) attributes {dimension_semantics = [#tpu.dimension_semantics<parallel>, #tpu.dimension_semantics<parallel>], iteration_bounds = array<i64: 2, 1>, scalar_prefetch = 1 : i64, scratch_operands = 0 : i64, tpu.core_type = #tpu.core_type<tc>, window_params = [{transform_indices = @transform_0, window_bounds = array<i64: 1, 1, 256>}, {transform_indices = @transform_1, window_bounds = array<i64: 1, 1, 1, 16>}]} {
    %c0 = arith.constant 0 : index
    %0 = memref.load %arg2[%c0] : memref<3xi32, #tpu.memory_space<smem>>
    %c1 = arith.constant 1 : index
    %1 = memref.load %arg2[%c1] : memref<3xi32, #tpu.memory_space<smem>>
    %c2 = arith.constant 2 : index
    %2 = memref.load %arg2[%c2] : memref<3xi32, #tpu.memory_space<smem>>
    %3 = tpu.iota {dimensions = array<i32: 0>} : vector<16x1xi32>
    %c0_i32 = arith.constant 0 : i32
    %4 = vector.broadcast %c0_i32 : i32 to vector<16xi32>
    %c0_i32_0 = arith.constant 0 : i32
    %c256_i32 = arith.constant 256 : i32
    %5 = arith.muli %c0_i32_0, %c256_i32 : i32
    %6 = tpu.assume_multiple %5, 128 : i32
    %c0_1 = arith.constant 0 : index
    %c0_2 = arith.constant 0 : index
    %7 = arith.index_cast %6 : i32 to index
    %8 = vector.load %arg3[%c0_1, %c0_2, %7] : memref<1x1x256xf32, #tpu.memory_space<vmem>>, vector<1x1x256xf32>
    %9 = vector.shape_cast %8 : vector<1x1x256xf32> to vector<1x256xf32>
    %10 = tpu.bitcast %9 : vector<1x256xf32> -> vector<1x256xi32>
    %11 = vector.broadcast %1 : i32 to vector<1x256xi32>
    %12 = arith.andi %10, %11 : vector<1x256xi32>
    %13 = vector.broadcast %0 : i32 to vector<1x256xi32>
    %14 = arith.cmpi eq, %12, %13 : vector<1x256xi32>
    %15 = vector.broadcast %2 : i32 to vector<1x256xi32>
    %16 = arith.shrsi %10, %15 : vector<1x256xi32>
    %c15_i32 = arith.constant 15 : i32
    %17 = vector.broadcast %c15_i32 : i32 to vector<1x256xi32>
    %18 = arith.andi %16, %17 : vector<1x256xi32>
    %19 = vector.broadcast %18 : vector<1x256xi32> to vector<16x256xi32>
    %20 = vector.broadcast %3 : vector<16x1xi32> to vector<16x256xi32>
    %21 = arith.cmpi eq, %19, %20 : vector<16x256xi32>
    %22 = vector.broadcast %14 : vector<1x256xi1> to vector<16x256xi1>
    %23 = arith.andi %21, %22 : vector<16x256xi1>
    %24 = arith.extui %23 : vector<16x256xi1> to vector<16x256xi32>
    %cst = arith.constant dense<0> : vector<16xi32>
    %25 = vector.multi_reduction <add>, %24, %cst [1] : vector<16x256xi32> to vector<16xi32>
    %26 = arith.addi %4, %25 : vector<16xi32>
    %c1_i32 = arith.constant 1 : i32
    %27 = vector.shape_cast %26 : vector<16xi32> to vector<1x1x1x16xi32>
    %c0_3 = arith.constant 0 : index
    %c0_4 = arith.constant 0 : index
    %c0_5 = arith.constant 0 : index
    %c0_6 = arith.constant 0 : index
    %28 = vector.load %arg4[%c0_3, %c0_4, %c0_5, %c0_6] : memref<1x1x1x16xi32, #tpu.memory_space<vmem>>, vector<1x1x1x16xi32>
    tpu.vector_store %arg4[%c0_3, %c0_4, %c0_5, %c0_6], %27 {strides = array<i32>} : memref<1x1x1x16xi32, #tpu.memory_space<vmem>>, vector<1x1x1x16xi32>,
    return
  }
  func.func @transform_0(%arg0: i32, %arg1: i32, %arg2: memref<3xi32, #tpu.memory_space<smem>>) -> (i32, i32, i32) {
    %c0_i32 = arith.constant 0 : i32
    %c0_i32_0 = arith.constant 0 : i32
    return %arg0, %c0_i32, %arg1 : i32, i32, i32
  }
  func.func @transform_1(%arg0: i32, %arg1: i32, %arg2: memref<3xi32, #tpu.memory_space<smem>>) -> (i32, i32, i32, i32) {
    %c0_i32 = arith.constant 0 : i32
    %c0_i32_0 = arith.constant 0 : i32
    %c0_i32_1 = arith.constant 0 : i32
    return %arg0, %arg1, %c0_i32, %c0_i32_0 : i32, i32, i32, i32
  }
}

</mosaic_0001>

<llo_original>
// kernel: ohem_cross_entropy.2
$region0: #{ohem_cross_entropy.2}
  #allocation0 [shape = 'u32[]', space=smem, size = 0x4, offset = 0x4, fixed_abs, tag = 'smem constant byte address 0x4 - core index']
  #allocation1 [shape = 'u32[144,128]{1,0:T(1,128)}', space=vmem, size = 0x12000, scoped, tag = 'internal scratch']
  %s0 = inlined_call_operand.vmem [shape: f32[2,4,256], index: 0, kind: input, shape index: {}]
  %s1 = inlined_call_operand.vmem [shape: s32[2,1,256], index: 1, kind: input, shape index: {}]
  %s2 = inlined_call_operand.vmem [shape: f32[2,1,256], index: 2, kind: output, shape index: {0}]
  %s3 = inlined_call_operand.vmem [shape: f32[2,1,256], index: 3, kind: output, shape index: {1}]
  %4 = xla_tuple %s2, %s3
  %s5 = sld [smem:[#allocation0]]
  $region49: #{ohem_cross_entropy.2} parent=0
    _
  %s7 = ssub.s32 1, %s5
  %s8 = scalar_select 0, %s7, %s5
  loop: start=0, step=1, limit=4
  $region2: #{ohem_cross_entropy.2} parent=0 // loop_pre_header
    _
  $region3: #{ohem_cross_entropy.2} parent=0 // loop_header
    %s10 = sphi 0, %s14
    %p11 = scmp.ge.s32.totalorder %s10, 4
    %s17 = sphi 0, %s29
    %s18 = sphi 0, %s25
    %s19 = sphi 0, %s17
    %s20 = sphi 0, %s18
    %s21 = sphi 0, %s19
    %s22 = sphi 0, %s20
    %s34 = sphi 0, %s36
    %s37 = sphi 0, %s34
    %s38 = sphi 0, %s37
    %s54 = sphi 0, %s38
    %s62 = sphi 0, %s64
    %s65 = sphi 0, %s62
    %s66 = sphi 0, %s65
    %s82 = sphi 0, %s66
    %s90 = sphi 0, %s92
    %s93 = sphi 0, %s90
    %s94 = sphi 0, %s93
    %s110 = sphi 0, %s94
    %s118 = sphi 0, %s120
    %s121 = sphi 0, %s118
    %s122 = sphi 0, %s121
    %s138 = sphi 0, %s122
  $region4: #{ohem_cross_entropy.2} parent=0 // loop_header_branch
    %13 = sbr.rel (%p11) target = $region8
  $region5: #{ohem_cross_entropy.2} parent=0 // loop_body
    %s15 = ssub.s32 %s10, 1
    %s16 = ssub.s32 %s10, 2
    %s23 = sadd.s32 1, %s18
    %p24 = scmp.ge.s32.totalorder %s23, 1
    %s25 = scalar_select %p24, 0, %s23
    %s26 = sadd.s32 1, %s17
    %s27 = scalar_select %p24, %s26, %s17
    %p28 = scmp.ge.s32.totalorder %s27, 2
    %s29 = scalar_select %p28, 0, %s27
    %s30 = ssub.s32 %s17, %s29
    %s31 = ssub.s32 %s18, %s25
    %s32 = sor.u32 %s30, %s31
    %p33 = scmp.eq.s32.totalorder %s32, 0
    %s35 = sadd.s32 %s34, 1
    %s36 = scalar_select %p33, %s34, %s35
    %p39 = pneg %p33
    %p40 = scmp.eq.s32.totalorder %s10, 1
    %p41 = por %p39, %p40
    %p42 = scmp.ne.s32.totalorder %s34, %s37
    %p43 = scmp.eq.s32.totalorder %s10, 0
    %p44 = por %p42, %p43
    %p45 = scmp.ne.s32.totalorder %s34, %s37
    %p46 = scmp.eq.s32.totalorder %s15, 1
    %p47 = por %p45, %p46
    %p48 = scmp.ne.s32.totalorder %s37, %s38
    %p49 = scmp.eq.s32.totalorder %s15, 0
    %p50 = por %p48, %p49
    %p51 = scmp.ne.s32.totalorder %s37, %s38
    %p52 = scmp.eq.s32.totalorder %s16, 1
    %p53 = por %p51, %p52
    %p55 = scmp.ne.s32.totalorder %s38, %s54
    %p56 = scmp.eq.s32.totalorder %s16, 0
    %p57 = por %p55, %p56
    %s58 = ssub.s32 %s17, %s29
    %s59 = ssub.s32 %s18, %s25
    %s60 = sor.u32 %s58, %s59
    %p61 = scmp.eq.s32.totalorder %s60, 0
    %s63 = sadd.s32 %s62, 1
    %s64 = scalar_select %p61, %s62, %s63
    %p67 = pneg %p61
    %p68 = scmp.eq.s32.totalorder %s10, 1
    %p69 = por %p67, %p68
    %p70 = scmp.ne.s32.totalorder %s62, %s65
    %p71 = scmp.eq.s32.totalorder %s10, 0
    %p72 = por %p70, %p71
    %p73 = scmp.ne.s32.totalorder %s62, %s65
    %p74 = scmp.eq.s32.totalorder %s15, 1
    %p75 = por %p73, %p74
    %p76 = scmp.ne.s32.totalorder %s65, %s66
    %p77 = scmp.eq.s32.totalorder %s15, 0
    %p78 = por %p76, %p77
    %p79 = scmp.ne.s32.totalorder %s65, %s66
    %p80 = scmp.eq.s32.totalorder %s16, 1
    %p81 = por %p79, %p80
    %p83 = scmp.ne.s32.totalorder %s66, %s82
    %p84 = scmp.eq.s32.totalorder %s16, 0
    %p85 = por %p83, %p84
    %s86 = ssub.s32 %s17, %s29
    %s87 = ssub.s32 %s18, %s25
    %s88 = sor.u32 %s86, %s87
    %p89 = scmp.eq.s32.totalorder %s88, 0
    %s91 = sadd.s32 %s90, 1
    %s92 = scalar_select %p89, %s90, %s91
    %p95 = pneg %p89
    %p96 = scmp.eq.s32.totalorder %s10, 1
    %p97 = por %p95, %p96
    %p98 = scmp.ne.s32.totalorder %s90, %s93
    %p99 = scmp.eq.s32.totalorder %s10, 0
    %p100 = por %p98, %p99
    %p101 = scmp.ne.s32.totalorder %s90, %s93
    %p102 = scmp.eq.s32.totalorder %s15, 1
    %p103 = por %p101, %p102
    %p104 = scmp.ne.s32.totalorder %s93, %s94
    %p105 = scmp.eq.s32.totalorder %s15, 0
    %p106 = por %p104, %p105
    %p107 = scmp.ne.s32.totalorder %s93, %s94
    %p108 = scmp.eq.s32.totalorder %s16, 1
    %p109 = por %p107, %p108
    %p111 = scmp.ne.s32.totalorder %s94, %s110
    %p112 = scmp.eq.s32.totalorder %s16, 0
    %p113 = por %p111, %p112
    %s114 = ssub.s32 %s17, %s29
    %s115 = ssub.s32 %s18, %s25
    %s116 = sor.u32 %s114, %s115
    %p117 = scmp.eq.s32.totalorder %s116, 0
    %s119 = sadd.s32 %s118, 1
    %s120 = scalar_select %p117, %s118, %s119
    %p123 = pneg %p117
    %p124 = scmp.eq.s32.totalorder %s10, 1
    %p125 = por %p123, %p124
    %p126 = scmp.ne.s32.totalorder %s118, %s121
    %p127 = scmp.eq.s32.totalorder %s10, 0
    %p128 = por %p126, %p127
    %p129 = scmp.ne.s32.totalorder %s118, %s121
    %p130 = scmp.eq.s32.totalorder %s15, 1
    %p131 = por %p129, %p130
    %p132 = scmp.ne.s32.totalorder %s121, %s122
    %p133 = scmp.eq.s32.totalorder %s15, 0
    %p134 = por %p132, %p133
    %p135 = scmp.ne.s32.totalorder %s121, %s122
    %p136 = scmp.eq.s32.totalorder %s16, 1
    %p137 = por %p135, %p136
    %p139 = scmp.ne.s32.totalorder %s122, %s138
    %p140 = scmp.eq.s32.totalorder %s16, 0
    %p141 = por %p139, %p140
    %p142 = scmp.le.s32.totalorder 1, %s10
    %p143 = scmp.lt.s32.totalorder %s10, 3
    %p144 = pnand %p142, %p143
    %p145 = pneg %p144
    // Predicated region
    $region9: #{ohem_cross_entropy.2} parent=5 // pred_check
      _
    $region10: #{ohem_cross_entropy.2} parent=5 // pred_check_branch
      %147 = sbr.rel (%p144) target = $region12
    $region11: #{ohem_cross_entropy.2} parent=5 // pred_region
      %s148 = ssub.s32 %s10, 1
    $region12: #{ohem_cross_entropy.2} parent=5 // pred_fallthru
      _
    %p149 = scmp.lt.s32.totalorder %s10, 2
    // Predicated region
    $region13: #{ohem_cross_entropy.2} parent=5 // pred_check
      %p150 = pneg %p149
    $region14: #{ohem_cross_entropy.2} parent=5 // pred_check_branch
      %152 = sbr.rel (%p150) target = $region16
    $region15: #{ohem_cross_entropy.2} parent=5 // pred_region
      // Predicated region
      $region17: #{ohem_cross_entropy.2} parent=15 // pred_check
        %p153 = pneg %p44
      $region18: #{ohem_cross_entropy.2} parent=15 // pred_check_branch
        %155 = sbr.rel (%p153) target = $region20
      $region19: #{ohem_cross_entropy.2} parent=15 // pred_region
        %s156 = smul.u32 2, %s18
        %p157 = scmp.lt.s32.totalorder %s17, 1
        %s158 = scalar_select %p157, %s17, 1
        %p159 = scmp.lt.s32.totalorder %s156, 1
        %s160 = scalar_select %p159, %s156, 1
        %s161 = smul.addr %s158, 2
        %s162 = sadd.s32 %s160, %s161
        %s163 = smul.addr %s162, 4
        %s164 = scalar_lea.vmem %s0, %s163
        %s165 = smul.u32 2, %s18
      $region20: #{ohem_cross_entropy.2} parent=15 // pred_fallthru
        _
      // Predicated region
      $region21: #{ohem_cross_entropy.2} parent=15 // pred_check
        %p166 = pneg %p72
      $region22: #{ohem_cross_entropy.2} parent=15 // pred_check_branch
        %168 = sbr.rel (%p166) target = $region24
      $region23: #{ohem_cross_entropy.2} parent=15 // pred_region
        %s169 = smul.u32 2, %s18
        %p170 = scmp.lt.s32.totalorder %s17, 1
        %s171 = scalar_select %p170, %s17, 1
        %p172 = scmp.lt.s32.totalorder %s169, 1
        %s173 = scalar_select %p172, %s169, 1
        %s174 = smul.addr %s171, 2
        %s175 = sadd.s32 %s173, %s174
        %s176 = scalar_lea.vmem %s1, %s175
        %s177 = smul.u32 2, %s18
      $region24: #{ohem_cross_entropy.2} parent=15 // pred_fallthru
        _
    $region16: #{ohem_cross_entropy.2} parent=5 // pred_fallthru
      _
    %p178 = scmp.le.s32.totalorder 1, %s10
    %p179 = scmp.lt.s32.totalorder %s10, 3
    %p180 = pnand %p178, %p179
    %p181 = pneg %p180
    // Predicated region
    $region25: #{ohem_cross_entropy.2} parent=5 // pred_check
      _
    $region26: #{ohem_cross_entropy.2} parent=5 // pred_check_branch
      %183 = sbr.rel (%p180) target = $region28
    $region27: #{ohem_cross_entropy.2} parent=5 // pred_region
      %s184 = ssub.s32 %s10, 1
      %s185 = smul.u32 2, %s20
      %p186 = scmp.lt.s32.totalorder %s19, 1
      %s187 = scalar_select %p186, %s19, 1
      %p188 = scmp.lt.s32.totalorder %s185, 1
      %s189 = scalar_select %p188, %s185, 1
      %s190 = smul.addr %s187, 2
      %s191 = sadd.s32 %s189, %s190
      %s192 = smul.addr %s191, 4
      %s193 = scalar_lea.vmem %s0, %s192
      %p194 = pneg %p50
      %p195 = pneg %p47
      %s196 = smul.u32 2, %s20
      %p197 = scmp.lt.s32.totalorder %s19, 1
      %s198 = scalar_select %p197, %s19, 1
      %p199 = scmp.lt.s32.totalorder %s196, 1
      %s200 = scalar_select %p199, %s196, 1
      %s201 = smul.addr %s198, 2
      %s202 = sadd.s32 %s200, %s201
      %s203 = scalar_lea.vmem %s1, %s202
      %p204 = pneg %p78
      %p205 = pneg %p75
      %p206 = pneg %p106
      %p207 = pneg %p103
      %s208 = smul.u32 2, %s20
      %p209 = scmp.lt.s32.totalorder %s19, 1
      %s210 = scalar_select %p209, %s19, 1
      %p211 = scmp.lt.s32.totalorder %s208, 1
      %s212 = scalar_select %p211, %s208, 1
      %s213 = smul.addr %s210, 2
      %s214 = sadd.s32 %s212, %s213
      %s215 = scalar_lea.vmem %s2, %s214
      %p216 = pneg %p134
      %p217 = pneg %p131
      %s218 = smul.u32 2, %s20
      %p219 = scmp.lt.s32.totalorder %s19, 1
      %s220 = scalar_select %p219, %s19, 1
      %p221 = scmp.lt.s32.totalorder %s218, 1
      %s222 = scalar_select %p221, %s218, 1
      %s223 = smul.addr %s220, 2
      %s224 = sadd.s32 %s222, %s223
      %s225 = scalar_lea.vmem %s3, %s224
      %s226 = smul.u32 2, %s20
      %p227 = scmp.lt.s32.totalorder %s19, 1
      %s228 = scalar_select %p227, %s19, 1
      %p229 = scmp.lt.s32.totalorder %s226, 1
      %s230 = scalar_select %p229, %s226, 1
      %s231 = smul.addr %s228, 2
      %s232 = sadd.s32 %s230, %s231
      %s233 = smul.addr %s232, 4
      %s234 = scalar_lea.vmem %s0, %s233
      %s235 = smul.u32 2, %s20
      %s236 = smul.u32 2, %s20
      %p237 = scmp.lt.s32.totalorder %s19, 1
      %s238 = scalar_select %p237, %s19, 1
      %p239 = scmp.lt.s32.totalorder %s236, 1
      %s240 = scalar_select %p239, %s236, 1
      %s241 = smul.addr %s238, 2
      %s242 = sadd.s32 %s240, %s241
      %s243 = scalar_lea.vmem %s1, %s242
      %s244 = smul.u32 2, %s20
      %s245 = smul.u32 2, %s20
      %p246 = scmp.lt.s32.totalorder %s19, 1
      %s247 = scalar_select %p246, %s19, 1
      %p248 = scmp.lt.s32.totalorder %s245, 1
      %s249 = scalar_select %p248, %s245, 1
      %s250 = smul.addr %s247, 2
      %s251 = sadd.s32 %s249, %s250
      %s252 = scalar_lea.vmem %s2, %s251
      %s253 = smul.u32 2, %s20
      %s254 = smul.u32 2, %s20
      %p255 = scmp.lt.s32.totalorder %s19, 1
      %s256 = scalar_select %p255, %s19, 1
      %p257 = scmp.lt.s32.totalorder %s254, 1
      %s258 = scalar_select %p257, %s254, 1
      %s259 = smul.addr %s256, 2
      %s260 = sadd.s32 %s258, %s259
      %s261 = scalar_lea.vmem %s3, %s260
      %s262 = smul.u32 2, %s20
      %v263 = vlaneseq
      %v264 = vshrl.u32 %v263, 7
      %v265 = vld [vmem:[%s234] sm:$0xff]
      %v266 = vld [vmem:[%s243] sm:$0x3]
      %vm267 = vcmp.ne.s32.totalorder %v266, 4294967295
      %v268 = vsel %vm267, %v266, 0
      %v270 = vcombine.high %v265, %v265
      %vm272 = vcmask 1043456
      %v273 = vsel %vm272, %v265, -inf
      %v274 = vrot.slane %v273, 4
      %v275 = vmax.f32 %v273, %v274
      %v276 = vrot.slane %v275, 2
      %v277 = vmax.f32 %v275, %v276
      %v278 = vrot.slane %v277, 1
      %v279 = vmax.f32 %v277, %v278
      %v280 = vsel %vm272, %v270, -inf
      %v281 = vrot.slane %v280, 4
      %v282 = vmax.f32 %v280, %v281
      %v283 = vrot.slane %v282, 2
      %v284 = vmax.f32 %v282, %v283
      %v285 = vrot.slane %v284, 1
      %v286 = vmax.f32 %v284, %v285
      %v289 = vcombine.low %v279, %v286
      %v291 = vsub.f32 %v265, %v289
      %v292 = vmul.f32 %v291, 1.442695
      %v293 = vpow.pop %v292
      %v295 = vcombine.high %v293, %v293
      %v297 = vsel %vm272, %v293, 0.0
      %v298 = vrot.slane %v297, 4
      %v299 = vadd.f32 %v297, %v298
      %v300 = vrot.slane %v299, 2
      %v301 = vadd.f32 %v299, %v300
      %v302 = vrot.slane %v301, 1
      %v303 = vadd.f32 %v301, %v302
      %v304 = vsel %vm272, %v295, 0.0
      %v305 = vrot.slane %v304, 4
      %v306 = vadd.f32 %v304, %v305
      %v307 = vrot.slane %v306, 2
      %v308 = vadd.f32 %v306, %v307
      %v309 = vrot.slane %v308, 1
      %v310 = vadd.f32 %v308, %v309
      %v311 = vlog2.pop %v303
      %v312 = vmul.f32 %v311, 0.6931472
      %v313 = vlog2.pop %v310
      %v314 = vmul.f32 %v313, 0.6931472
      %v315 = vlaneseq
      %v316 = vshrl.u32 %v315, 7
      %v317 = vsub.s32 0, %v316
      %v318 = vrot.slane %v268, %v317
      %v319 = vlaneseq
      %v320 = vshrl.u32 %v319, 7
      %v321 = vsub.s32 1, %v320
      %v322 = vrot.slane %v268, %v321
      %vm323 = vcmp.eq.s32.totalorder %v264, %v318
      %vm324 = vcmp.eq.s32.totalorder %v264, %v322
      %v326 = vcombine.high %v291, %v291
      %v328 = vsel %vm323, %v291, 0.0
      %v329 = vsel %vm324, %v326, 0.0
      %v330 = vsel %vm272, %v328, 0.0
      %v331 = vrot.slane %v330, 4
      %v332 = vadd.f32 %v330, %v331
      %v333 = vrot.slane %v332, 2
      %v334 = vadd.f32 %v332, %v333
      %v335 = vrot.slane %v334, 1
      %v336 = vadd.f32 %v334, %v335
      %v337 = vsel %vm272, %v329, 0.0
      %v338 = vrot.slane %v337, 4
      %v339 = vadd.f32 %v337, %v338
      %v340 = vrot.slane %v339, 2
      %v341 = vadd.f32 %v339, %v340
      %v342 = vrot.slane %v341, 1
      %v343 = vadd.f32 %v341, %v342
      %v344 = vsub.f32 %v312, %v336
      %v345 = vsub.f32 %v314, %v343
      %v346 = vsub.f32 %v336, %v312
      %v347 = vsub.f32 %v343, %v314
      %v348 = vmul.f32 %v346, 1.442695
      %v349 = vpow.pop %v348
      %v350 = vmul.f32 %v347, 1.442695
      %v351 = vpow.pop %v350
      %v354 = vcombine.low %v344, %v345
      %v356 = vunpack.c.l.s4 1966171168
      %v357 = vunpack.c.0.s8 %v356
      %v358 = vlaneseq
      %v359 = vshrl.u32 %v358, 7
      %v360 = vsub.s32 %v357, %v359
      %v361 = vrot.slane %v354, %v360
      %v363 = vunpack.c.l.s4 1966171168
      %v364 = vunpack.c.0.s8 %v363
      %v365 = vlaneseq
      %v366 = vshrl.u32 %v365, 7
      %v367 = vsub.s32 %v364, %v366
      %v368 = vrot.slane %v361, %v367
      %v370 = vsel %vm267, %v368, 0.0
      %v371 = vlaneseq
      %vm372 = vcmp.ge.s32.totalorder %v371, 0
      %vm373 = vcmp.lt.s32.totalorder %v371, 256
      %vm374 = vmand %vm372, %vm373
      %375 = vst.msk [vmem:[%s252] sm:$0x3] %vm374, %v370
      %v378 = vcombine.low %v349, %v351
      %v380 = vunpack.c.l.s4 1966171168
      %v381 = vunpack.c.0.s8 %v380
      %v382 = vlaneseq
      %v383 = vshrl.u32 %v382, 7
      %v384 = vsub.s32 %v381, %v383
      %v385 = vrot.slane %v378, %v384
      %v387 = vunpack.c.l.s4 1966171168
      %v388 = vunpack.c.0.s8 %v387
      %v389 = vlaneseq
      %v390 = vshrl.u32 %v389, 7
      %v391 = vsub.s32 %v388, %v390
      %v392 = vrot.slane %v385, %v391
      %v394 = vsel %vm267, %v392, inf
      %395 = vst.msk [vmem:[%s261] sm:$0x3] %vm374, %v394
      %s396 = smul.u32 2, %s20
      %p397 = scmp.lt.s32.totalorder %s19, 1
      %s398 = scalar_select %p397, %s19, 1
      %p399 = scmp.lt.s32.totalorder %s396, 1
      %s400 = scalar_select %p399, %s396, 1
      %s401 = smul.addr %s398, 2
      %s402 = sadd.s32 %s400, %s401
      %s403 = scalar_lea.vmem %s2, %s402
      %s404 = smul.u32 2, %s20
      %p405 = scmp.lt.s32.totalorder %s19, 1
      %s406 = scalar_select %p405, %s19, 1
      %p407 = scmp.lt.s32.totalorder %s404, 1
      %s408 = scalar_select %p407, %s404, 1
      %s409 = smul.addr %s406, 2
      %s410 = sadd.s32 %s408, %s409
      %s411 = scalar_lea.vmem %s3, %s410
      // Predicated region
      $region29: #{ohem_cross_entropy.2} parent=27 // pred_check
        %p412 = pneg %p103
      $region30: #{ohem_cross_entropy.2} parent=27 // pred_check_branch
        %414 = sbr.rel (%p412) target = $region32
      $region31: #{ohem_cross_entropy.2} parent=27 // pred_region
        %s415 = smul.u32 2, %s20
      $region32: #{ohem_cross_entropy.2} parent=27 // pred_fallthru
        _
      // Predicated region
      $region33: #{ohem_cross_entropy.2} parent=27 // pred_check
        %p416 = pneg %p131
      $region34: #{ohem_cross_entropy.2} parent=27 // pred_check_branch
        %418 = sbr.rel (%p416) target = $region36
      $region35: #{ohem_cross_entropy.2} parent=27 // pred_region
        %s419 = smul.u32 2, %s20
      $region36: #{ohem_cross_entropy.2} parent=27 // pred_fallthru
        _
    $region28: #{ohem_cross_entropy.2} parent=5 // pred_fallthru
      _
    %p420 = scmp.le.s32.totalorder 2, %s10
    // Predicated region
    $region37: #{ohem_cross_entropy.2} parent=5 // pred_check
      %p421 = pneg %p420
    $region38: #{ohem_cross_entropy.2} parent=5 // pred_check_branch
      %423 = sbr.rel (%p421) target = $region40
    $region39: #{ohem_cross_entropy.2} parent=5 // pred_region
      %s424 = ssub.s32 %s10, 2
      // Predicated region
      $region41: #{ohem_cross_entropy.2} parent=39 // pred_check
        %p425 = pneg %p109
      $region42: #{ohem_cross_entropy.2} parent=39 // pred_check_branch
        %427 = sbr.rel (%p425) target = $region44
      $region43: #{ohem_cross_entropy.2} parent=39 // pred_region
        %s428 = smul.u32 2, %s22
        %p429 = scmp.lt.s32.totalorder %s21, 1
        %s430 = scalar_select %p429, %s21, 1
        %p431 = scmp.lt.s32.totalorder %s428, 1
        %s432 = scalar_select %p431, %s428, 1
        %s433 = smul.addr %s430, 2
        %s434 = sadd.s32 %s432, %s433
        %s435 = scalar_lea.vmem %s2, %s434
      $region44: #{ohem_cross_entropy.2} parent=39 // pred_fallthru
        _
      // Predicated region
      $region45: #{ohem_cross_entropy.2} parent=39 // pred_check
        %p436 = pneg %p137
      $region46: #{ohem_cross_entropy.2} parent=39 // pred_check_branch
        %438 = sbr.rel (%p436) target = $region48
      $region47: #{ohem_cross_entropy.2} parent=39 // pred_region
        %s439 = smul.u32 2, %s22
        %p440 = scmp.lt.s32.totalorder %s21, 1
        %s441 = scalar_select %p440, %s21, 1
        %p442 = scmp.lt.s32.totalorder %s439, 1
        %s443 = scalar_select %p442, %s439, 1
        %s444 = smul.addr %s441, 2
        %s445 = sadd.s32 %s443, %s444
        %s446 = scalar_lea.vmem %s3, %s445
      $region48: #{ohem_cross_entropy.2} parent=39 // pred_fallthru
        _
    $region40: #{ohem_cross_entropy.2} parent=5 // pred_fallthru
      _
  $region6: #{ohem_cross_entropy.2} parent=0 // loop_footer
    %s14 = sadd.s32 1, %s10
  $region7: #{ohem_cross_entropy.2} parent=0 // loop_footer_branch
    %9 = sbr.rel target = $region3
  $region8: #{ohem_cross_entropy.2} parent=0 // loop_exit
    _

// kernel: ohem_cross_entropy.3
$region0: #{ohem_cross_entropy.3}
  #allocation0 [shape = 'u32[]', space=smem, size = 0x4, offset = 0x4, fixed_abs, tag = 'smem constant byte address 0x4 - core index']
  #allocation1 [shape = 'u32[144,128]{1,0:T(1,128)}', space=vmem, size = 0x12000, scoped, tag = 'internal scratch']
  #allocation2 [shape = 's32[1]{0}', space=sflag, size = 0x4, scoped, tag = 'scoped memory for ohem_cross_entropy.3']
  #allocation3 [shape = 's32[1]{0:T(128)S(6)}', space=smem, size = 0x200, scoped, tag = 'prefetched SMEM operand 0']
  %s0 = inlined_call_operand.<no memory space> [shape: s32[1], index: 0, kind: input, shape index: {}]
  %s1 = inlined_call_operand.vmem [shape: f32[2,1,256], index: 1, kind: input, shape index: {}]
  %s2 = inlined_call_operand.vmem [shape: f32[2,1,256], index: 2, kind: input, shape index: {}]
  %s3 = inlined_call_operand.vmem [shape: f32[2,1,1,1], index: 3, kind: output, shape index: {0}]
  %s4 = inlined_call_operand.vmem [shape: f32[2,1,1,1], index: 4, kind: output, shape index: {1}]
  %5 = xla_tuple %s3, %s4
  %s6 = sld [smem:[#allocation0]]
  $region49: #{ohem_cross_entropy.3} parent=0
    _
  %s8 = ssub.s32 1, %s6
  %s9 = scalar_select 0, %s8, %s6
  %10 = sst [smem:[#allocation3]] %s0
  loop: start=0, step=1, limit=4
  $region2: #{ohem_cross_entropy.3} parent=0 // loop_pre_header
    _
  $region3: #{ohem_cross_entropy.3} parent=0 // loop_header
    %s12 = sphi 0, %s16
    %p13 = scmp.ge.s32.totalorder %s12, 4
    %s19 = sphi 0, %s31
    %s20 = sphi 0, %s27
    %s21 = sphi 0, %s19
    %s22 = sphi 0, %s20
    %s23 = sphi 0, %s21
    %s24 = sphi 0, %s22
    %s36 = sphi 0, %s38
    %s39 = sphi 0, %s36
    %s40 = sphi 0, %s39
    %s56 = sphi 0, %s40
    %s64 = sphi 0, %s66
    %s67 = sphi 0, %s64
    %s68 = sphi 0, %s67
    %s84 = sphi 0, %s68
    %s92 = sphi 0, %s94
    %s95 = sphi 0, %s92
    %s96 = sphi 0, %s95
    %s112 = sphi 0, %s96
    %s120 = sphi 0, %s122
    %s123 = sphi 0, %s120
    %s124 = sphi 0, %s123
    %s140 = sphi 0, %s124
  $region4: #{ohem_cross_entropy.3} parent=0 // loop_header_branch
    %15 = sbr.rel (%p13) target = $region8
  $region5: #{ohem_cross_entropy.3} parent=0 // loop_body
    %s17 = ssub.s32 %s12, 1
    %s18 = ssub.s32 %s12, 2
    %s25 = sadd.s32 1, %s20
    %p26 = scmp.ge.s32.totalorder %s25, 1
    %s27 = scalar_select %p26, 0, %s25
    %s28 = sadd.s32 1, %s19
    %s29 = scalar_select %p26, %s28, %s19
    %p30 = scmp.ge.s32.totalorder %s29, 2
    %s31 = scalar_select %p30, 0, %s29
    %s32 = ssub.s32 %s19, %s31
    %s33 = ssub.s32 %s20, %s27
    %s34 = sor.u32 %s32, %s33
    %p35 = scmp.eq.s32.totalorder %s34, 0
    %s37 = sadd.s32 %s36, 1
    %s38 = scalar_select %p35, %s36, %s37
    %p41 = pneg %p35
    %p42 = scmp.eq.s32.totalorder %s12, 1
    %p43 = por %p41, %p42
    %p44 = scmp.ne.s32.totalorder %s36, %s39
    %p45 = scmp.eq.s32.totalorder %s12, 0
    %p46 = por %p44, %p45
    %p47 = scmp.ne.s32.totalorder %s36, %s39
    %p48 = scmp.eq.s32.totalorder %s17, 1
    %p49 = por %p47, %p48
    %p50 = scmp.ne.s32.totalorder %s39, %s40
    %p51 = scmp.eq.s32.totalorder %s17, 0
    %p52 = por %p50, %p51
    %p53 = scmp.ne.s32.totalorder %s39, %s40
    %p54 = scmp.eq.s32.totalorder %s18, 1
    %p55 = por %p53, %p54
    %p57 = scmp.ne.s32.totalorder %s40, %s56
    %p58 = scmp.eq.s32.totalorder %s18, 0
    %p59 = por %p57, %p58
    %s60 = ssub.s32 %s19, %s31
    %s61 = ssub.s32 %s20, %s27
    %s62 = sor.u32 %s60, %s61
    %p63 = scmp.eq.s32.totalorder %s62, 0
    %s65 = sadd.s32 %s64, 1
    %s66 = scalar_select %p63, %s64, %s65
    %p69 = pneg %p63
    %p70 = scmp.eq.s32.totalorder %s12, 1
    %p71 = por %p69, %p70
    %p72 = scmp.ne.s32.totalorder %s64, %s67
    %p73 = scmp.eq.s32.totalorder %s12, 0
    %p74 = por %p72, %p73
    %p75 = scmp.ne.s32.totalorder %s64, %s67
    %p76 = scmp.eq.s32.totalorder %s17, 1
    %p77 = por %p75, %p76
    %p78 = scmp.ne.s32.totalorder %s67, %s68
    %p79 = scmp.eq.s32.totalorder %s17, 0
    %p80 = por %p78, %p79
    %p81 = scmp.ne.s32.totalorder %s67, %s68
    %p82 = scmp.eq.s32.totalorder %s18, 1
    %p83 = por %p81, %p82
    %p85 = scmp.ne.s32.totalorder %s68, %s84
    %p86 = scmp.eq.s32.totalorder %s18, 0
    %p87 = por %p85, %p86
    %s88 = ssub.s32 %s19, %s31
    %s89 = ssub.s32 %s20, %s27
    %s90 = sor.u32 %s88, %s89
    %p91 = scmp.eq.s32.totalorder %s90, 0
    %s93 = sadd.s32 %s92, 1
    %s94 = scalar_select %p91, %s92, %s93
    %p97 = pneg %p91
    %p98 = scmp.eq.s32.totalorder %s12, 1
    %p99 = por %p97, %p98
    %p100 = scmp.ne.s32.totalorder %s92, %s95
    %p101 = scmp.eq.s32.totalorder %s12, 0
    %p102 = por %p100, %p101
    %p103 = scmp.ne.s32.totalorder %s92, %s95
    %p104 = scmp.eq.s32.totalorder %s17, 1
    %p105 = por %p103, %p104
    %p106 = scmp.ne.s32.totalorder %s95, %s96
    %p107 = scmp.eq.s32.totalorder %s17, 0
    %p108 = por %p106, %p107
    %p109 = scmp.ne.s32.totalorder %s95, %s96
    %p110 = scmp.eq.s32.totalorder %s18, 1
    %p111 = por %p109, %p110
    %p113 = scmp.ne.s32.totalorder %s96, %s112
    %p114 = scmp.eq.s32.totalorder %s18, 0
    %p115 = por %p113, %p114
    %s116 = ssub.s32 %s19, %s31
    %s117 = ssub.s32 %s20, %s27
    %s118 = sor.u32 %s116, %s117
    %p119 = scmp.eq.s32.totalorder %s118, 0
    %s121 = sadd.s32 %s120, 1
    %s122 = scalar_select %p119, %s120, %s121
    %p125 = pneg %p119
    %p126 = scmp.eq.s32.totalorder %s12, 1
    %p127 = por %p125, %p126
    %p128 = scmp.ne.s32.totalorder %s120, %s123
    %p129 = scmp.eq.s32.totalorder %s12, 0
    %p130 = por %p128, %p129
    %p131 = scmp.ne.s32.totalorder %s120, %s123
    %p132 = scmp.eq.s32.totalorder %s17, 1
    %p133 = por %p131, %p132
    %p134 = scmp.ne.s32.totalorder %s123, %s124
    %p135 = scmp.eq.s32.totalorder %s17, 0
    %p136 = por %p134, %p135
    %p137 = scmp.ne.s32.totalorder %s123, %s124
    %p138 = scmp.eq.s32.totalorder %s18, 1
    %p139 = por %p137, %p138
    %p141 = scmp.ne.s32.totalorder %s124, %s140
    %p142 = scmp.eq.s32.totalorder %s18, 0
    %p143 = por %p141, %p142
    %p144 = scmp.le.s32.totalorder 1, %s12
    %p145 = scmp.lt.s32.totalorder %s12, 3
    %p146 = pnand %p144, %p145
    %p147 = pneg %p146
    // Predicated region
    $region9: #{ohem_cross_entropy.3} parent=5 // pred_check
      _
    $region10: #{ohem_cross_entropy.3} parent=5 // pred_check_branch
      %149 = sbr.rel (%p146) target = $region12
    $region11: #{ohem_cross_entropy.3} parent=5 // pred_region
      %s150 = ssub.s32 %s12, 1
    $region12: #{ohem_cross_entropy.3} parent=5 // pred_fallthru
      _
    %p151 = scmp.lt.s32.totalorder %s12, 2
    // Predicated region
    $region13: #{ohem_cross_entropy.3} parent=5 // pred_check
      %p152 = pneg %p151
    $region14: #{ohem_cross_entropy.3} parent=5 // pred_check_branch
      %154 = sbr.rel (%p152) target = $region16
    $region15: #{ohem_cross_entropy.3} parent=5 // pred_region
      // Predicated region
      $region17: #{ohem_cross_entropy.3} parent=15 // pred_check
        %p155 = pneg %p46
      $region18: #{ohem_cross_entropy.3} parent=15 // pred_check_branch
        %157 = sbr.rel (%p155) target = $region20
      $region19: #{ohem_cross_entropy.3} parent=15 // pred_region
        %s158 = smul.u32 2, %s20
        %p159 = scmp.lt.s32.totalorder %s19, 1
        %s160 = scalar_select %p159, %s19, 1
        %p161 = scmp.lt.s32.totalorder %s158, 1
        %s162 = scalar_select %p161, %s158, 1
        %s163 = smul.addr %s160, 2
        %s164 = sadd.s32 %s162, %s163
        %s165 = scalar_lea.vmem %s1, %s164
        %s166 = smul.u32 2, %s20
      $region20: #{ohem_cross_entropy.3} parent=15 // pred_fallthru
        _
      // Predicated region
      $region21: #{ohem_cross_entropy.3} parent=15 // pred_check
        %p167 = pneg %p74
      $region22: #{ohem_cross_entropy.3} parent=15 // pred_check_branch
        %169 = sbr.rel (%p167) target = $region24
      $region23: #{ohem_cross_entropy.3} parent=15 // pred_region
        %s170 = smul.u32 2, %s20
        %p171 = scmp.lt.s32.totalorder %s19, 1
        %s172 = scalar_select %p171, %s19, 1
        %p173 = scmp.lt.s32.totalorder %s170, 1
        %s174 = scalar_select %p173, %s170, 1
        %s175 = smul.addr %s172, 2
        %s176 = sadd.s32 %s174, %s175
        %s177 = scalar_lea.vmem %s2, %s176
        %s178 = smul.u32 2, %s20
      $region24: #{ohem_cross_entropy.3} parent=15 // pred_fallthru
        _
    $region16: #{ohem_cross_entropy.3} parent=5 // pred_fallthru
      _
    %p179 = scmp.le.s32.totalorder 1, %s12
    %p180 = scmp.lt.s32.totalorder %s12, 3
    %p181 = pnand %p179, %p180
    %p182 = pneg %p181
    // Predicated region
    $region25: #{ohem_cross_entropy.3} parent=5 // pred_check
      _
    $region26: #{ohem_cross_entropy.3} parent=5 // pred_check_branch
      %184 = sbr.rel (%p181) target = $region28
    $region27: #{ohem_cross_entropy.3} parent=5 // pred_region
      %s185 = ssub.s32 %s12, 1
      %s186 = smul.u32 2, %s22
      %p187 = scmp.lt.s32.totalorder %s21, 1
      %s188 = scalar_select %p187, %s21, 1
      %p189 = scmp.lt.s32.totalorder %s186, 1
      %s190 = scalar_select %p189, %s186, 1
      %s191 = smul.addr %s188, 2
      %s192 = sadd.s32 %s190, %s191
      %s193 = scalar_lea.vmem %s1, %s192
      %p194 = pneg %p52
      %p195 = pneg %p49
      %s196 = smul.u32 2, %s22
      %p197 = scmp.lt.s32.totalorder %s21, 1
      %s198 = scalar_select %p197, %s21, 1
      %p199 = scmp.lt.s32.totalorder %s196, 1
      %s200 = scalar_select %p199, %s196, 1
      %s201 = smul.addr %s198, 2
      %s202 = sadd.s32 %s200, %s201
      %s203 = scalar_lea.vmem %s2, %s202
      %p204 = pneg %p80
      %p205 = pneg %p77
      %p206 = pneg %p108
      %p207 = pneg %p105
      %p208 = scmp.lt.s32.totalorder %s21, 1
      %s209 = scalar_select %p208, %s21, 1
      %p210 = scmp.lt.s32.totalorder %s22, 0
      %s211 = scalar_select %p210, %s22, 0
      %s212 = sadd.s32 %s211, %s209
      %s213 = scalar_lea.vmem %s3, %s212
      %p214 = pneg %p136
      %p215 = pneg %p133
      %p216 = scmp.lt.s32.totalorder %s21, 1
      %s217 = scalar_select %p216, %s21, 1
      %p218 = scmp.lt.s32.totalorder %s22, 0
      %s219 = scalar_select %p218, %s22, 0
      %s220 = sadd.s32 %s219, %s217
      %s221 = scalar_lea.vmem %s4, %s220
      %s222 = smul.u32 2, %s22
      %p223 = scmp.lt.s32.totalorder %s21, 1
      %s224 = scalar_select %p223, %s21, 1
      %p225 = scmp.lt.s32.totalorder %s222, 1
      %s226 = scalar_select %p225, %s222, 1
      %s227 = smul.addr %s224, 2
      %s228 = sadd.s32 %s226, %s227
      %s229 = scalar_lea.vmem %s1, %s228
      %s230 = smul.u32 2, %s22
      %s231 = smul.u32 2, %s22
      %p232 = scmp.lt.s32.totalorder %s21, 1
      %s233 = scalar_select %p232, %s21, 1
      %p234 = scmp.lt.s32.totalorder %s231, 1
      %s235 = scalar_select %p234, %s231, 1
      %s236 = smul.addr %s233, 2
      %s237 = sadd.s32 %s235, %s236
      %s238 = scalar_lea.vmem %s2, %s237
      %s239 = smul.u32 2, %s22
      %p240 = scmp.lt.s32.totalorder %s21, 1
      %s241 = scalar_select %p240, %s21, 1
      %p242 = scmp.lt.s32.totalorder %s22, 0
      %s243 = scalar_select %p242, %s22, 0
      %s244 = sadd.s32 %s243, %s241
      %s245 = scalar_lea.vmem %s3, %s244
      %p246 = scmp.lt.s32.totalorder %s21, 1
      %s247 = scalar_select %p246, %s21, 1
      %p248 = scmp.lt.s32.totalorder %s22, 0
      %s249 = scalar_select %p248, %s22, 0
      %s250 = sadd.s32 %s249, %s247
      %s251 = scalar_lea.vmem %s4, %s250
      %s252 = sld [smem:[#allocation3]]
      %v253 = vld [vmem:[%s238] sm:$0x3]
      %v255 = vlaneseq
      %v256 = vshrl.u32 %v255, 7
      %v257 = vsub.s32 0, %v256
      %v258 = vrot.slane %v253, %v257
      %v259 = vlaneseq
      %v260 = vshrl.u32 %v259, 7
      %v261 = vsub.s32 1, %v260
      %v262 = vrot.slane %v253, %v261
      %v263 = vstv %s252
      %vm264 = vcmp.lt.s32.totalorder %v258, %v263
      %vm265 = vcmp.lt.s32.totalorder %v262, %v263
      %v266 = vsel %vm264, 1, 0
      %v267 = vsel %vm265, 1, 0
      %v268 = vcvt.s32.f32 %v266
      %v269 = vcvt.s32.f32 %v267
      %v270 = vld [vmem:[%s229] sm:$0x3]
      %v272 = vlaneseq
      %v273 = vshrl.u32 %v272, 7
      %v274 = vsub.s32 0, %v273
      %v275 = vrot.slane %v270, %v274
      %v276 = vlaneseq
      %v277 = vshrl.u32 %v276, 7
      %v278 = vsub.s32 1, %v277
      %v279 = vrot.slane %v270, %v278
      %v282 = vmul.f32 %v268, %v275
      %v283 = vmul.f32 %v269, %v279
      %vm284 = vcmask 1040384
      %v285 = vsel %vm284, %v282, 0.0
      %v286 = vsel %vm284, %v283, 0.0
      %v287 = vadd.f32 %v285, %v286
      %288 = vadd.xlane.f32.xlu0 %v287
      %v289 = vpop.xlane.xlu0 %288
      %v290 = vrot.slane %v289, 4
      %v291 = vadd.f32 %v289, %v290
      %v292 = vrot.slane %v291, 2
      %v293 = vadd.f32 %v291, %v292
      %v294 = vrot.slane %v293, 1
      %v295 = vadd.f32 %v293, %v294
      %s296 = vtos %v295
      %v297 = vstv %s296
      %v298 = vadd.f32 %v297, 0.0
      %v299 = vsel %vm284, %v268, 0.0
      %v300 = vsel %vm284, %v269, 0.0
      %v301 = vadd.f32 %v299, %v300
      %302 = vadd.xlane.f32.xlu0 %v301
      %v303 = vpop.xlane.xlu0 %302
      %v304 = vrot.slane %v303, 4
      %v305 = vadd.f32 %v303, %v304
      %v306 = vrot.slane %v305, 2
      %v307 = vadd.f32 %v305, %v306
      %v308 = vrot.slane %v307, 1
      %v309 = vadd.f32 %v307, %v308
      %s310 = vtos %v309
      %v311 = vstv %s310
      %v312 = vadd.f32 %v311, 0.0
      %vm313 = vcmask 0
      %314 = vst.msk [vmem:[%s245] sm:$0x1] %vm313, %v298
      %315 = vst.msk [vmem:[%s251] sm:$0x1] %vm313, %v312
      %p316 = scmp.lt.s32.totalorder %s21, 1
      %s317 = scalar_select %p316, %s21, 1
      %p318 = scmp.lt.s32.totalorder %s22, 0
      %s319 = scalar_select %p318, %s22, 0
      %s320 = sadd.s32 %s319, %s317
      %s321 = scalar_lea.vmem %s3, %s320
      %p322 = scmp.lt.s32.totalorder %s21, 1
      %s323 = scalar_select %p322, %s21, 1
      %p324 = scmp.lt.s32.totalorder %s22, 0
      %s325 = scalar_select %p324, %s22, 0
      %s326 = sadd.s32 %s325, %s323
      %s327 = scalar_lea.vmem %s4, %s326
      // Predicated region
      $region29: #{ohem_cross_entropy.3} parent=27 // pred_check
        %p328 = pneg %p105
      $region30: #{ohem_cross_entropy.3} parent=27 // pred_check_branch
        %330 = sbr.rel (%p328) target = $region32
      $region31: #{ohem_cross_entropy.3} parent=27 // pred_region
        _
      $region32: #{ohem_cross_entropy.3} parent=27 // pred_fallthru
        _
      // Predicated region
      $region33: #{ohem_cross_entropy.3} parent=27 // pred_check
        %p331 = pneg %p133
      $region34: #{ohem_cross_entropy.3} parent=27 // pred_check_branch
        %333 = sbr.rel (%p331) target = $region36
      $region35: #{ohem_cross_entropy.3} parent=27 // pred_region
        _
      $region36: #{ohem_cross_entropy.3} parent=27 // pred_fallthru
        _
    $region28: #{ohem_cross_entropy.3} parent=5 // pred_fallthru
      _
    %p334 = scmp.le.s32.totalorder 2, %s12
    // Predicated region
    $region37: #{ohem_cross_entropy.3} parent=5 // pred_check
      %p335 = pneg %p334
    $region38: #{ohem_cross_entropy.3} parent=5 // pred_check_branch
      %337 = sbr.rel (%p335) target = $region40
    $region39: #{ohem_cross_entropy.3} parent=5 // pred_region
      %s338 = ssub.s32 %s12, 2
      // Predicated region
      $region41: #{ohem_cross_entropy.3} parent=39 // pred_check
        %p339 = pneg %p111
      $region42: #{ohem_cross_entropy.3} parent=39 // pred_check_branch
        %341 = sbr.rel (%p339) target = $region44
      $region43: #{ohem_cross_entropy.3} parent=39 // pred_region
        %p342 = scmp.lt.s32.totalorder %s23, 1
        %s343 = scalar_select %p342, %s23, 1
        %p344 = scmp.lt.s32.totalorder %s24, 0
        %s345 = scalar_select %p344, %s24, 0
        %s346 = sadd.s32 %s345, %s343
        %s347 = scalar_lea.vmem %s3, %s346
      $region44: #{ohem_cross_entropy.3} parent=39 // pred_fallthru
        _
      // Predicated region
      $region45: #{ohem_cross_entropy.3} parent=39 // pred_check
        %p348 = pneg %p139
      $region46: #{ohem_cross_entropy.3} parent=39 // pred_check_branch
        %350 = sbr.rel (%p348) target = $region48
      $region47: #{ohem_cross_entropy.3} parent=39 // pred_region
        %p351 = scmp.lt.s32.totalorder %s23, 1
        %s352 = scalar_select %p351, %s23, 1
        %p353 = scmp.lt.s32.totalorder %s24, 0
        %s354 = scalar_select %p353, %s24, 0
        %s355 = sadd.s32 %s354, %s352
        %s356 = scalar_lea.vmem %s4, %s355
      $region48: #{ohem_cross_entropy.3} parent=39 // pred_fallthru
        _
    $region40: #{ohem_cross_entropy.3} parent=5 // pred_fallthru
      _
  $region6: #{ohem_cross_entropy.3} parent=0 // loop_footer
    %s16 = sadd.s32 1, %s12
  $region7: #{ohem_cross_entropy.3} parent=0 // loop_footer_branch
    %11 = sbr.rel target = $region3
  $region8: #{ohem_cross_entropy.3} parent=0 // loop_exit
    _

// kernel: branch_1_fun.8
$region0: #{branch_1_fun.8}
  #allocation0 [shape = 'u32[]', space=smem, size = 0x4, offset = 0x4, fixed_abs, tag = 'smem constant byte address 0x4 - core index']
  #allocation1 [shape = 'u32[144,128]{1,0:T(1,128)}', space=vmem, size = 0x12000, scoped, tag = 'internal scratch']
  #allocation2 [shape = 's32[1]{0}', space=sflag, size = 0x4, scoped, tag = 'scoped memory for branch_1_fun.8']
  #allocation3 [shape = 'u8[512]{0}', space=smem, size = 0x200, scoped, tag = 'prefetched SMEM operand 0']
  %s0 = inlined_call_operand.vmem [shape: s32[3], index: 0, kind: input, shape index: {}]
  %s1 = inlined_call_operand.vmem [shape: f32[2,1,256], index: 1, kind: input, shape index: {}]
  %s2 = inlined_call_operand.vmem [shape: s32[2,1,1,16], index: 2, kind: output, shape index: {}]
  %s3 = sld [smem:[#allocation0]]
  $region37: #{branch_1_fun.8} parent=0
    _
  %s5 = ssub.s32 1, %s3
  %s6 = scalar_select 0, %s5, %s3
  %s7 = sshll.u32 %s0, 4
  %s8 = int_to_ptr.vmem [resolvable:$true] %s7
  %10 = dma.vmem_to_smem %s8, 16, [#allocation3], [#allocation2]
  %11 = dma.done [#allocation2], 16
  %12 = sfence
  loop: start=0, step=1, limit=4
  $region2: #{branch_1_fun.8} parent=0 // loop_pre_header
    _
  $region3: #{branch_1_fun.8} parent=0 // loop_header
    %s14 = sphi 0, %s18
    %p15 = scmp.ge.s32.totalorder %s14, 4
    %s21 = sphi 0, %s33
    %s22 = sphi 0, %s29
    %s23 = sphi 0, %s21
    %s24 = sphi 0, %s22
    %s25 = sphi 0, %s23
    %s26 = sphi 0, %s24
    %s38 = sphi 0, %s40
    %s41 = sphi 0, %s38
    %s42 = sphi 0, %s41
    %s58 = sphi 0, %s42
    %s66 = sphi 0, %s68
    %s69 = sphi 0, %s66
    %s70 = sphi 0, %s69
    %s86 = sphi 0, %s70
  $region4: #{branch_1_fun.8} parent=0 // loop_header_branch
    %17 = sbr.rel (%p15) target = $region8
  $region5: #{branch_1_fun.8} parent=0 // loop_body
    %s19 = ssub.s32 %s14, 1
    %s20 = ssub.s32 %s14, 2
    %s27 = sadd.s32 1, %s22
    %p28 = scmp.ge.s32.totalorder %s27, 1
    %s29 = scalar_select %p28, 0, %s27
    %s30 = sadd.s32 1, %s21
    %s31 = scalar_select %p28, %s30, %s21
    %p32 = scmp.ge.s32.totalorder %s31, 2
    %s33 = scalar_select %p32, 0, %s31
    %s34 = ssub.s32 %s21, %s33
    %s35 = ssub.s32 %s22, %s29
    %s36 = sor.u32 %s34, %s35
    %p37 = scmp.eq.s32.totalorder %s36, 0
    %s39 = sadd.s32 %s38, 1
    %s40 = scalar_select %p37, %s38, %s39
    %p43 = pneg %p37
    %p44 = scmp.eq.s32.totalorder %s14, 1
    %p45 = por %p43, %p44
    %p46 = scmp.ne.s32.totalorder %s38, %s41
    %p47 = scmp.eq.s32.totalorder %s14, 0
    %p48 = por %p46, %p47
    %p49 = scmp.ne.s32.totalorder %s38, %s41
    %p50 = scmp.eq.s32.totalorder %s19, 1
    %p51 = por %p49, %p50
    %p52 = scmp.ne.s32.totalorder %s41, %s42
    %p53 = scmp.eq.s32.totalorder %s19, 0
    %p54 = por %p52, %p53
    %p55 = scmp.ne.s32.totalorder %s41, %s42
    %p56 = scmp.eq.s32.totalorder %s20, 1
    %p57 = por %p55, %p56
    %p59 = scmp.ne.s32.totalorder %s42, %s58
    %p60 = scmp.eq.s32.totalorder %s20, 0
    %p61 = por %p59, %p60
    %s62 = ssub.s32 %s21, %s33
    %s63 = ssub.s32 %s22, %s29
    %s64 = sor.u32 %s62, %s63
    %p65 = scmp.eq.s32.totalorder %s64, 0
    %s67 = sadd.s32 %s66, 1
    %s68 = scalar_select %p65, %s66, %s67
    %p71 = pneg %p65
    %p72 = scmp.eq.s32.totalorder %s14, 1
    %p73 = por %p71, %p72
    %p74 = scmp.ne.s32.totalorder %s66, %s69
    %p75 = scmp.eq.s32.totalorder %s14, 0
    %p76 = por %p74, %p75
    %p77 = scmp.ne.s32.totalorder %s66, %s69
    %p78 = scmp.eq.s32.totalorder %s19, 1
    %p79 = por %p77, %p78
    %p80 = scmp.ne.s32.totalorder %s69, %s70
    %p81 = scmp.eq.s32.totalorder %s19, 0
    %p82 = por %p80, %p81
    %p83 = scmp.ne.s32.totalorder %s69, %s70
    %p84 = scmp.eq.s32.totalorder %s20, 1
    %p85 = por %p83, %p84
    %p87 = scmp.ne.s32.totalorder %s70, %s86
    %p88 = scmp.eq.s32.totalorder %s20, 0
    %p89 = por %p87, %p88
    %p90 = scmp.le.s32.totalorder 1, %s14
    %p91 = scmp.lt.s32.totalorder %s14, 3
    %p92 = pnand %p90, %p91
    %p93 = pneg %p92
    // Predicated region
    $region9: #{branch_1_fun.8} parent=5 // pred_check
      _
    $region10: #{branch_1_fun.8} parent=5 // pred_check_branch
      %95 = sbr.rel (%p92) target = $region12
    $region11: #{branch_1_fun.8} parent=5 // pred_region
      %s96 = ssub.s32 %s14, 1
    $region12: #{branch_1_fun.8} parent=5 // pred_fallthru
      _
    %p97 = scmp.lt.s32.totalorder %s14, 2
    // Predicated region
    $region13: #{branch_1_fun.8} parent=5 // pred_check
      %p98 = pneg %p97
    $region14: #{branch_1_fun.8} parent=5 // pred_check_branch
      %100 = sbr.rel (%p98) target = $region16
    $region15: #{branch_1_fun.8} parent=5 // pred_region
      // Predicated region
      $region17: #{branch_1_fun.8} parent=15 // pred_check
        %p101 = pneg %p48
      $region18: #{branch_1_fun.8} parent=15 // pred_check_branch
        %103 = sbr.rel (%p101) target = $region20
      $region19: #{branch_1_fun.8} parent=15 // pred_region
        %s104 = smul.u32 2, %s22
        %p105 = scmp.lt.s32.totalorder %s21, 1
        %s106 = scalar_select %p105, %s21, 1
        %p107 = scmp.lt.s32.totalorder %s104, 1
        %s108 = scalar_select %p107, %s104, 1
        %s109 = smul.addr %s106, 2
        %s110 = sadd.s32 %s108, %s109
        %s111 = scalar_lea.vmem %s1, %s110
        %s112 = smul.u32 2, %s22
      $region20: #{branch_1_fun.8} parent=15 // pred_fallthru
        _
    $region16: #{branch_1_fun.8} parent=5 // pred_fallthru
      _
    %p113 = scmp.le.s32.totalorder 1, %s14
    %p114 = scmp.lt.s32.totalorder %s14, 3
    %p115 = pnand %p113, %p114
    %p116 = pneg %p115
    // Predicated region
    $region21: #{branch_1_fun.8} parent=5 // pred_check
      _
    $region22: #{branch_1_fun.8} parent=5 // pred_check_branch
      %118 = sbr.rel (%p115) target = $region24
    $region23: #{branch_1_fun.8} parent=5 // pred_region
      %s119 = ssub.s32 %s14, 1
      %s120 = smul.u32 2, %s24
      %p121 = scmp.lt.s32.totalorder %s23, 1
      %s122 = scalar_select %p121, %s23, 1
      %p123 = scmp.lt.s32.totalorder %s120, 1
      %s124 = scalar_select %p123, %s120, 1
      %s125 = smul.addr %s122, 2
      %s126 = sadd.s32 %s124, %s125
      %s127 = scalar_lea.vmem %s1, %s126
      %p128 = pneg %p54
      %p129 = pneg %p51
      %p130 = pneg %p82
      %p131 = pneg %p79
      %p132 = scmp.lt.s32.totalorder %s23, 1
      %s133 = scalar_select %p132, %s23, 1
      %p134 = scmp.lt.s32.totalorder %s24, 0
      %s135 = scalar_select %p134, %s24, 0
      %s136 = sadd.s32 %s135, %s133
      %s137 = scalar_lea.vmem %s2, %s136
      %s138 = smul.u32 2, %s24
      %p139 = scmp.lt.s32.totalorder %s23, 1
      %s140 = scalar_select %p139, %s23, 1
      %p141 = scmp.lt.s32.totalorder %s138, 1
      %s142 = scalar_select %p141, %s138, 1
      %s143 = smul.addr %s140, 2
      %s144 = sadd.s32 %s142, %s143
      %s145 = scalar_lea.vmem %s1, %s144
      %s146 = smul.u32 2, %s24
      %p147 = scmp.lt.s32.totalorder %s23, 1
      %s148 = scalar_select %p147, %s23, 1
      %p149 = scmp.lt.s32.totalorder %s24, 0
      %s150 = scalar_select %p149, %s24, 0
      %s151 = sadd.s32 %s150, %s148
      %s152 = scalar_lea.vmem %s2, %s151
      %s153 = sld [smem:[#allocation3]]
      %s154 = sld [smem:[#allocation3 + $0x1]]
      %s155 = sld [smem:[#allocation3 + $0x2]]
      %v156 = vlaneseq
      %v157 = vshrl.u32 %v156, 7
      %v158 = vadd.s32 %v157, 8
      %v159 = vld [vmem:[%s145] sm:$0x3]
      %v161 = vlaneseq
      %v162 = vshrl.u32 %v161, 7
      %v163 = vsub.s32 0, %v162
      %v164 = vrot.slane %v159, %v163
      %v165 = vlaneseq
      %v166 = vshrl.u32 %v165, 7
      %v167 = vsub.s32 1, %v166
      %v168 = vrot.slane %v159, %v167
      %v169 = vstv %s154
      %v170 = vand.u32 %v164, %v169
      %v171 = vand.u32 %v168, %v169
      %v172 = vstv %s153
      %vm173 = vcmp.eq.s32.totalorder %v170, %v172
      %vm174 = vcmp.eq.s32.totalorder %v171, %v172
      %v175 = vstv %s155
      %v176 = vshra.s32 %v164, %v175
      %v177 = vshra.s32 %v168, %v175
      %v178 = vand.u32 %v176, 15
      %v179 = vand.u32 %v177, 15
      %v180 = vlaneseq
      %v181 = vshrl.u32 %v180, 7
      %v182 = vsub.s32 0, %v181
      %v183 = vrot.slane %v178, %v182
      %v184 = vlaneseq
      %v185 = vshrl.u32 %v184, 7
      %v186 = vsub.s32 0, %v185
      %v187 = vrot.slane %v179, %v186
      %vm188 = vcmp.eq.s32.totalorder %v183, %v157
      %vm189 = vcmp.eq.s32.totalorder %v187, %v157
      %vm190 = vcmp.eq.s32.totalorder %v183, %v158
      %vm191 = vcmp.eq.s32.totalorder %v187, %v158
      %v192 = vsel %vm173, 1, 0
      %v193 = vsel %vm174, 1, 0
      %v194 = vlaneseq
      %v195 = vshrl.u32 %v194, 7
      %v196 = vsub.s32 0, %v195
      %v197 = vrot.slane %v192, %v196
      %v198 = vlaneseq
      %v199 = vshrl.u32 %v198, 7
      %v200 = vsub.s32 0, %v199
      %v201 = vrot.slane %v193, %v200
      %vm202 = vcmp.eq.s32.totalorder %v197, 1
      %vm203 = vcmp.eq.s32.totalorder %v201, 1
      %vm204 = vmand %vm188, %vm202
      %vm205 = vmand %vm189, %vm203
      %vm206 = vmand %vm190, %vm202
      %vm207 = vmand %vm191, %vm203
      %v208 = vsel %vm204, 1, 0
      %v209 = vsel %vm205, 1, 0
      %v210 = vsel %vm206, 1, 0
      %v211 = vsel %vm207, 1, 0
      %v212 = vadd.s32 %v208, %v209
      %v213 = vand.u32 %v212, 65535
      %v214 = vshrl.u32 %v212, 16
      %v215 = vcvt.s32.f32 %v213
      %v216 = vcvt.s32.f32 %v214
      %217 = vadd.xlane.f32.xlu0 %v215
      %v218 = vpop.xlane.xlu0 %217
      %219 = vadd.xlane.f32.xlu0 %v216
      %v220 = vpop.xlane.xlu0 %219
      %v221 = vcvt.f32.s32 %v218
      %v222 = vcvt.f32.s32 %v220
      %v223 = vshll.u32 %v222, 16
      %v224 = vadd.s32 %v223, %v221
      %v225 = vadd.s32 %v210, %v211
      %v226 = vand.u32 %v225, 65535
      %v227 = vshrl.u32 %v225, 16
      %v228 = vcvt.s32.f32 %v226
      %v229 = vcvt.s32.f32 %v227
      %230 = vadd.xlane.f32.xlu0 %v228
      %v231 = vpop.xlane.xlu0 %230
      %232 = vadd.xlane.f32.xlu0 %v229
      %v233 = vpop.xlane.xlu0 %232
      %v234 = vcvt.f32.s32 %v231
      %v235 = vcvt.f32.s32 %v233
      %v236 = vshll.u32 %v235, 16
      %v237 = vadd.s32 %v236, %v234
      %v238 = vlaneseq
      %v239 = vand.u32 %v238, 127
      %v240 = vlaneseq
      %v241 = vshrl.u32 %v240, 7
      %v242 = vsub.s32 %v239, %v241
      %v243 = vrot.slane %v224, %v242
      %v244 = vadd.s32 %v239, 4294967288
      %v245 = vlaneseq
      %v246 = vshrl.u32 %v245, 7
      %v247 = vsub.s32 %v244, %v246
      %v248 = vrot.slane %v237, %v247
      %vm249 = vcmask 130112
      %v250 = vsel %vm249, %v248, %v243
      %vm251 = vcmask 122880
      %252 = vst.msk [vmem:[%s152] sm:$0x1] %vm251, %v250
      %p253 = scmp.lt.s32.totalorder %s23, 1
      %s254 = scalar_select %p253, %s23, 1
      %p255 = scmp.lt.s32.totalorder %s24, 0
      %s256 = scalar_select %p255, %s24, 0
      %s257 = sadd.s32 %s256, %s254
      %s258 = scalar_lea.vmem %s2, %s257
      // Predicated region
      $region25: #{branch_1_fun.8} parent=23 // pred_check
        %p259 = pneg %p79
      $region26: #{branch_1_fun.8} parent=23 // pred_check_branch
        %261 = sbr.rel (%p259) target = $region28
      $region27: #{branch_1_fun.8} parent=23 // pred_region
        _
      $region28: #{branch_1_fun.8} parent=23 // pred_fallthru
        _
    $region24: #{branch_1_fun.8} parent=5 // pred_fallthru
      _
    %p262 = scmp.le.s32.totalorder 2, %s14
    // Predicated region
    $region29: #{branch_1_fun.8} parent=5 // pred_check
      %p263 = pneg %p262
    $region30: #{branch_1_fun.8} parent=5 // pred_check_branch
      %265 = sbr.rel (%p263) target = $region32
    $region31: #{branch_1_fun.8} parent=5 // pred_region
      %s266 = ssub.s32 %s14, 2
      // Predicated region
      $region33: #{branch_1_fun.8} parent=31 // pred_check
        %p267 = pneg %p85
      $region34: #{branch_1_fun.8} parent=31 // pred_check_branch
        %269 = sbr.rel (%p267) target = $region36
      $region35: #{branch_1_fun.8} parent=31 // pred_region
        %p270 = scmp.lt.s32.totalorder %s25, 1
        %s271 = scalar_select %p270, %s25, 1
        %p272 = scmp.lt.s32.totalorder %s26, 0
        %s273 = scalar_select %p272, %s26, 0
        %s274 = sadd.s32 %s273, %s271
        %s275 = scalar_lea.vmem %s2, %s274
      $region36: #{branch_1_fun.8} parent=31 // pred_fallthru
        _
    $region32: #{branch_1_fun.8} parent=5 // pred_fallthru
      _
  $region6: #{branch_1_fun.8} parent=0 // loop_footer
    %s18 = sadd.s32 1, %s14
  $region7: #{branch_1_fun.8} parent=0 // loop_footer_branch
    %13 = sbr.rel target = $region3
  $region8: #{branch_1_fun.8} parent=0 // loop_exit
    _

</llo_original>
